<compile_context>
chip_gen: v7x
topology: tpu7x:2x2x1
jax: 0.10.0
libtpu: 0.0.40
codegen_flags: <defaults>
</compile_context>

<pallas_src>
import functools

import jax
import jax.numpy as jnp
from jax.experimental import pallas as pl
from jax.experimental.pallas import tpu as pltpu

# Per-input block byte target (review: 4-8 MiB) and the scoped-VMEM limit we
# request.  44 MiB is safely under v7x's 64 MiB physical VMEM while raising
# v5e's 16 MiB / v6e's 32 MiB default scoped limits enough for the fat blocks.
_BLOCK_BYTES = 6 << 20
_VMEM_LIMIT_BYTES = 44 << 20


def _dice_kernel(pred_ref, targ_ref, loss_ref, num_acc, den_acc,
                 *, smooth, p, d, tile_d, masked):
    """One grid step reduces a (bn, tile_d) slab of predict/target.

    num_acc, den_acc : f32 VMEM scratch (bn, 1), persist across the D sweep.
    loss_ref         : (bn, 128) per-sample dice loss (lane-broadcast), written
                       on the last D step of each batch block.
    """
    k = pl.program_id(1)              # reduction (D) axis, innermost
    last = pl.num_programs(1) - 1

    @pl.when(k == 0)
    def _():
        num_acc[...] = jnp.zeros_like(num_acc)
        den_acc[...] = jnp.zeros_like(den_acc)

    pr_raw = pred_ref[...].astype(jnp.float32)
    tg_raw = targ_ref[...].astype(jnp.float32)

    def accumulate(pr, tg):
        # num += sum(predict * target, dim=1); den += sum(pred^p + targ^p, dim=1)
        num_acc[...] += jnp.sum(pr * tg, axis=1, keepdims=True)
        if p == 2:
            pw = pr * pr + tg * tg
        elif p == 1:
            pw = pr + tg
        else:
            pw = pr ** p + tg ** p
        den_acc[...] += jnp.sum(pw, axis=1, keepdims=True)

    if masked:
        # Mask work only on the ragged final D tile; every other step stays on
        # the unmasked fast path (no iota/compare/where in the hot loop).
        @pl.when(k < last)
        def _():
            accumulate(pr_raw, tg_raw)

        @pl.when(k == last)
        def _():
            # Out-of-bounds lanes of the padded final tile are undefined;
            # select-0 them (select, not multiply, so NaN garbage can't leak).
            col = jax.lax.broadcasted_iota(jnp.int32, pr_raw.shape, 1) + k * tile_d
            valid = col < d
            accumulate(jnp.where(valid, pr_raw, 0.0),
                       jnp.where(valid, tg_raw, 0.0))
    else:
        accumulate(pr_raw, tg_raw)

    @pl.when(k == last)
    def _():
        num = num_acc[...] + smooth
        den = den_acc[...] + smooth
        loss = 1.0 - num / den        # (bn, 1)
        # Lane-dense store: broadcast to the full 128-lane output block.
        loss_ref[...] = jnp.broadcast_to(loss, loss_ref.shape).astype(loss_ref.dtype)


def _min_sublane(dtype):
    # Minimum sublane tile: 8 for 4-byte types, 16 for bf16, 32 for int8/fp8.
    return max(8, 32 // jnp.dtype(dtype).itemsize)


def binary_dice_loss(predict, target, smooth=1.0, p=2, reduction="mean",
                     block_n=None, tile_d=None):
    assert predict.shape[0] == target.shape[0], \
        "predict & target batch size don't match"
    n = predict.shape[0]
    pred2 = predict.reshape(n, -1)
    targ2 = target.reshape(n, -1)
    d = pred2.shape[1]

    isz_p = jnp.dtype(pred2.dtype).itemsize
    isz_t = jnp.dtype(targ2.dtype).itemsize
    isz = max(isz_p, isz_t)
    min_sub = max(_min_sublane(pred2.dtype), _min_sublane(targ2.dtype))

    # --- reduction tile size (lane axis, multiple of 128) ---------------------
    d_pad = pl.cdiv(d, 128) * 128
    if tile_d is None:
        # Fill the byte budget assuming the minimum batch block first.
        tile_d = max(128, (_BLOCK_BYTES // (min_sub * isz)) // 128 * 128)
    tile_d = min(tile_d, d_pad)

    # --- batch block size ------------------------------------------------------
    if block_n is None:
        if n <= min_sub:
            bn = n                      # full-dim block (allowed for any n)
        else:
            n_pad = pl.cdiv(n, min_sub) * min_sub
            bn_cap = n_pad
            if n >= 2 * min_sub:
                # Keep >= 2 batch blocks so v7x's second TensorCore has work.
                bn_cap = max(min_sub, ((n_pad // 2) // min_sub) * min_sub)
            # Grow bn to hit the block byte budget when tile_d got capped at D.
            bn_fill = max(min_sub,
                          (_BLOCK_BYTES // (tile_d * isz)) // min_sub * min_sub)
            bn = min(bn_cap, bn_fill)
    else:
        bn = block_n

    nb = pl.cdiv(n, bn)
    kd = pl.cdiv(d, tile_d)
    masked = (d % tile_d) != 0
    if masked:
        # Zero-masked lanes contribute 0 to the denominator only when p > 0.
        assert p > 0, "ragged last D tile requires p > 0"

    kernel = functools.partial(_dice_kernel, smooth=float(smooth), p=p,
                               d=d, tile_d=tile_d, masked=masked)

    # Advisory cost for XLA's scheduler: this call is a pure HBM stream.
    cost = pl.CostEstimate(
        flops=int(6 * n * d),
        transcendentals=0,
        bytes_accessed=int(n * d * (isz_p + isz_t) + n * 128 * 4))

    per_sample = pl.pallas_call(
        kernel,
        out_shape=jax.ShapeDtypeStruct((n, 128), jnp.float32),
        grid_spec=pltpu.PrefetchScalarGridSpec(
            num_scalar_prefetch=0,
            grid=(nb, kd),  # batch blocks (parallel) x D tiles (reduction, last)
            in_specs=[
                pl.BlockSpec((bn, tile_d), lambda i, k: (i, k)),
                pl.BlockSpec((bn, tile_d), lambda i, k: (i, k)),
            ],
            out_specs=pl.BlockSpec((bn, 128), lambda i, k: (i, 0)),
            scratch_shapes=[
                pltpu.VMEM((bn, 1), jnp.float32),
                pltpu.VMEM((bn, 1), jnp.float32),
            ],
        ),
        compiler_params=pltpu.CompilerParams(
            dimension_semantics=("parallel", "arbitrary"),
            vmem_limit_bytes=_VMEM_LIMIT_BYTES),
        cost_estimate=cost,
    )(pred2, targ2)

    loss = per_sample[:, 0]  # shape [N]
    if reduction == "mean":
        return loss.mean()
    elif reduction == "sum":
        return loss.sum()
    elif reduction == "none":
        return loss
    else:
        raise Exception("Unexpected reduction {}".format(reduction))


def _reference(predict, target, smooth=1.0, p=2, reduction="mean"):
    n = predict.shape[0]
    pr = predict.reshape(n, -1).astype(jnp.float32)
    tg = target.reshape(n, -1).astype(jnp.float32)
    num = jnp.sum(pr * tg, axis=1) + smooth
    den = jnp.sum(pr ** p + tg ** p, axis=1) + smooth
    loss = 1.0 - num / den
    if reduction == "mean":
        return loss.mean()
    if reduction == "sum":
        return loss.sum()
    return loss


if __name__ == "__main__":
    key = jax.random.PRNGKey(0)
    k1, k2, k3, k4, k5, k6 = jax.random.split(key, 6)

    # Test 1: spec-like NCHW shapes, 'mean' reduction (D = 4*16*16 = 1024).
    N, C, H, W = 2, 4, 16, 16
    predict = jax.nn.sigmoid(jax.random.normal(k1, (N, C, H, W), jnp.float32))
    target = (jax.random.uniform(k2, (N, C, H, W)) > 0.5).astype(jnp.float32)
    out = jax.block_until_ready(
        binary_dice_loss(predict, target, smooth=1.0, p=2, reduction="mean"))
    ref = _reference(predict, target, smooth=1.0, p=2, reduction="mean")
    assert jnp.allclose(out, ref, rtol=1e-5, atol=1e-5), (out, ref)

    # Test 2: ragged D (189) + batch not a multiple of the sublane tile, 'none'.
    N2, C2, H2, W2 = 10, 3, 7, 9
    p2 = jax.nn.sigmoid(jax.random.normal(k3, (N2, C2, H2, W2), jnp.float32))
    t2 = (jax.random.uniform(k4, (N2, C2, H2, W2)) > 0.5).astype(jnp.float32)
    out2 = jax.block_until_ready(binary_dice_loss(p2, t2, reduction="none"))
    ref2 = _reference(p2, t2, reduction="none")
    assert jnp.allclose(out2, ref2, rtol=1e-5, atol=1e-5), (out2, ref2)

    # Test 3: bf16 predict (half the HBM bytes), f32 accumulation, 'sum'.
    N3, C3, H3, W3 = 3, 2, 5, 5
    p3 = jax.nn.sigmoid(
        jax.random.normal(k5, (N3, C3, H3, W3), jnp.float32)).astype(jnp.bfloat16)
    t3 = (jax.random.uniform(k6, (N3, C3, H3, W3)) > 0.5).astype(jnp.float32)
    out3 = jax.block_until_ready(binary_dice_loss(p3, t3, reduction="sum"))
    ref3 = _reference(p3, t3, reduction="sum")
    assert jnp.allclose(out3, ref3, rtol=1e-4, atol=1e-4), (out3, ref3)

    # Test 4: multi-D-tile reduction path with a ragged final tile, forced small
    # tiles so the masked-last-step/unmasked-hot-loop split is exercised.
    N4 = 9
    p4 = jax.nn.sigmoid(jax.random.normal(k1, (N4, 5, 11, 13), jnp.float32))
    t4 = (jax.random.uniform(k2, (N4, 5, 11, 13)) > 0.5).astype(jnp.float32)
    out4 = jax.block_until_ready(
        binary_dice_loss(p4, t4, reduction="none", block_n=8, tile_d=256))
    ref4 = _reference(p4, t4, reduction="none")
    assert jnp.allclose(out4, ref4, rtol=1e-5, atol=1e-5), (out4, ref4)

    print("KERNEL_OK")
</pallas_src>

<mosaic_0001>
module attributes {stable_mosaic.version = 11 : i64} {
  func.func @_dice_kernel(%arg0: i32, %arg1: i32, %arg2: memref<2x1024xf32, #tpu.memory_space<vmem>>, %arg3: memref<2x1024xf32, #tpu.memory_space<vmem>>, %arg4: memref<2x128xf32, #tpu.memory_space<vmem>>, %arg5: memref<2x1xf32, #tpu.memory_space<vmem>>, %arg6: memref<2x1xf32, #tpu.memory_space<vmem>>) attributes {dimension_semantics = [#tpu.dimension_semantics<parallel>, #tpu.dimension_semantics<arbitrary>], iteration_bounds = array<i64: 1, 1>, scalar_prefetch = 0 : i64, scratch_operands = 2 : i64, tpu.core_type = #tpu.core_type<tc>, window_params = [{transform_indices = @transform_0, window_bounds = array<i64: 2, 1024>}, {transform_indices = @transform_1, window_bounds = array<i64: 2, 1024>}, {transform_indices = @transform_2, window_bounds = array<i64: 2, 128>}]} {
    %c0_i32 = arith.constant 0 : i32
    %0 = arith.cmpi eq, %arg1, %c0_i32 : i32
    %1 = arith.extui %0 : i1 to i32
    %c0_i32_0 = arith.constant 0 : i32
    %2 = arith.cmpi ne, %1, %c0_i32_0 : i32
    scf.if %2 {
      %cst_15 = arith.constant 0.000000e+00 : f32
      %22 = vector.broadcast %cst_15 : f32 to vector<2x1xf32>
      %c0_16 = arith.constant 0 : index
      %c0_17 = arith.constant 0 : index
      %23 = vector.load %arg5[%c0_16, %c0_17] : memref<2x1xf32, #tpu.memory_space<vmem>>, vector<2x1xf32>
      tpu.vector_store %arg5[%c0_16, %c0_17], %22 {strides = array<i32>} : memref<2x1xf32, #tpu.memory_space<vmem>>, vector<2x1xf32>,
      %cst_18 = arith.constant 0.000000e+00 : f32
      %24 = vector.broadcast %cst_18 : f32 to vector<2x1xf32>
      %c0_19 = arith.constant 0 : index
      %c0_20 = arith.constant 0 : index
      %25 = vector.load %arg6[%c0_19, %c0_20] : memref<2x1xf32, #tpu.memory_space<vmem>>, vector<2x1xf32>
      tpu.vector_store %arg6[%c0_19, %c0_20], %24 {strides = array<i32>} : memref<2x1xf32, #tpu.memory_space<vmem>>, vector<2x1xf32>,
    } else {
    }
    %c0 = arith.constant 0 : index
    %c0_1 = arith.constant 0 : index
    %3 = vector.load %arg2[%c0, %c0_1] : memref<2x1024xf32, #tpu.memory_space<vmem>>, vector<2x1024xf32>
    %c0_2 = arith.constant 0 : index
    %c0_3 = arith.constant 0 : index
    %4 = vector.load %arg3[%c0_2, %c0_3] : memref<2x1024xf32, #tpu.memory_space<vmem>>, vector<2x1024xf32>
    %c0_4 = arith.constant 0 : index
    %c0_5 = arith.constant 0 : index
    %5 = vector.load %arg5[%c0_4, %c0_5] : memref<2x1xf32, #tpu.memory_space<vmem>>, vector<2x1xf32>
    %6 = arith.mulf %3, %4 : vector<2x1024xf32>
    %cst = arith.constant dense<0.000000e+00> : vector<2xf32>
    %7 = vector.multi_reduction <add>, %6, %cst [1] : vector<2x1024xf32> to vector<2xf32>
    %8 = vector.shape_cast %7 : vector<2xf32> to vector<2x1xf32>
    %9 = arith.addf %5, %8 : vector<2x1xf32>
    %c0_6 = arith.constant 0 : index
    %c0_7 = arith.constant 0 : index
    %10 = vector.load %arg5[%c0_6, %c0_7] : memref<2x1xf32, #tpu.memory_space<vmem>>, vector<2x1xf32>
    tpu.vector_store %arg5[%c0_6, %c0_7], %9 {strides = array<i32>} : memref<2x1xf32, #tpu.memory_space<vmem>>, vector<2x1xf32>,
    %11 = arith.mulf %3, %3 : vector<2x1024xf32>
    %12 = arith.mulf %4, %4 : vector<2x1024xf32>
    %13 = arith.addf %11, %12 : vector<2x1024xf32>
    %c0_8 = arith.constant 0 : index
    %c0_9 = arith.constant 0 : index
    %14 = vector.load %arg6[%c0_8, %c0_9] : memref<2x1xf32, #tpu.memory_space<vmem>>, vector<2x1xf32>
    %cst_10 = arith.constant dense<0.000000e+00> : vector<2xf32>
    %15 = vector.multi_reduction <add>, %13, %cst_10 [1] : vector<2x1024xf32> to vector<2xf32>
    %16 = vector.shape_cast %15 : vector<2xf32> to vector<2x1xf32>
    %17 = arith.addf %14, %16 : vector<2x1xf32>
    %c0_11 = arith.constant 0 : index
    %c0_12 = arith.constant 0 : index
    %18 = vector.load %arg6[%c0_11, %c0_12] : memref<2x1xf32, #tpu.memory_space<vmem>>, vector<2x1xf32>
    tpu.vector_store %arg6[%c0_11, %c0_12], %17 {strides = array<i32>} : memref<2x1xf32, #tpu.memory_space<vmem>>, vector<2x1xf32>,
    %c0_i32_13 = arith.constant 0 : i32
    %19 = arith.cmpi eq, %arg1, %c0_i32_13 : i32
    %20 = arith.extui %19 : i1 to i32
    %c0_i32_14 = arith.constant 0 : i32
    %21 = arith.cmpi ne, %20, %c0_i32_14 : i32
    scf.if %21 {
      %c0_15 = arith.constant 0 : index
      %c0_16 = arith.constant 0 : index
      %22 = vector.load %arg5[%c0_15, %c0_16] : memref<2x1xf32, #tpu.memory_space<vmem>>, vector<2x1xf32>
      %cst_17 = arith.constant 1.000000e+00 : f32
      %23 = vector.broadcast %cst_17 : f32 to vector<2x1xf32>
      %24 = arith.addf %22, %23 : vector<2x1xf32>
      %c0_18 = arith.constant 0 : index
      %c0_19 = arith.constant 0 : index
      %25 = vector.load %arg6[%c0_18, %c0_19] : memref<2x1xf32, #tpu.memory_space<vmem>>, vector<2x1xf32>
      %cst_20 = arith.constant 1.000000e+00 : f32
      %26 = vector.broadcast %cst_20 : f32 to vector<2x1xf32>
      %27 = arith.addf %25, %26 : vector<2x1xf32>
      %28 = arith.divf %24, %27 : vector<2x1xf32>
      %cst_21 = arith.constant 1.000000e+00 : f32
      %29 = vector.broadcast %cst_21 : f32 to vector<2x1xf32>
      %30 = arith.subf %29, %28 : vector<2x1xf32>
      %31 = vector.shape_cast %30 : vector<2x1xf32> to vector<2x1xf32>
      %32 = vector.broadcast %31 : vector<2x1xf32> to vector<2x128xf32>
      %c0_22 = arith.constant 0 : index
      %c0_23 = arith.constant 0 : index
      %33 = vector.load %arg4[%c0_22, %c0_23] : memref<2x128xf32, #tpu.memory_space<vmem>>, vector<2x128xf32>
      tpu.vector_store %arg4[%c0_22, %c0_23], %32 {strides = array<i32>} : memref<2x128xf32, #tpu.memory_space<vmem>>, vector<2x128xf32>,
    } else {
    }
    return
  }
  func.func @transform_0(%arg0: i32, %arg1: i32) -> (i32, i32) {
    %c0_i32 = arith.constant 0 : i32
    return %arg0, %arg1 : i32, i32
  }
  func.func @transform_1(%arg0: i32, %arg1: i32) -> (i32, i32) {
    %c0_i32 = arith.constant 0 : i32
    return %arg0, %arg1 : i32, i32
  }
  func.func @transform_2(%arg0: i32, %arg1: i32) -> (i32, i32) {
    %c0_i32 = arith.constant 0 : i32
    %c0_i32_0 = arith.constant 0 : i32
    return %arg0, %c0_i32 : i32, i32
  }
}

</mosaic_0001>

<llo_original>
// kernel: tpu_custom_call.1
$region0: #{tpu_custom_call.1}
  #allocation0 [shape = 'u32[]', space=smem, size = 0x4, offset = 0x4, fixed_abs, tag = 'smem constant byte address 0x4 - core index']
  #allocation1 [shape = 'u32[144,128]{1,0:T(1,128)}', space=vmem, size = 0x12000, scoped, tag = 'internal scratch']
  #allocation2 [shape = 'f32[2,1]{1,0:T(2,128)}', space=vmem, size = 0x400, scoped, tag = 'scratch operand']
  #allocation3 [shape = 'f32[2,1]{1,0:T(2,128)}', space=vmem, size = 0x400, scoped, tag = 'scratch operand']
  %s0 = inlined_call_operand.hbm [shape: f32[2,1024], index: 0, kind: input, shape index: {}]
  %s1 = inlined_call_operand.hbm [shape: f32[2,1024], index: 1, kind: input, shape index: {}]
  %s2 = inlined_call_operand.hbm [shape: f32[2,128], index: 2, kind: output, shape index: {}]
  %s3 = sld [smem:[#allocation0]]
  $region34: #{tpu_custom_call.1} parent=0
    _
  %s5 = ssub.s32 1, %s3
  %s6 = scalar_select 0, %s5, %s3
  $region1: #{tpu_custom_call.1} parent=0
    #allocation4 [shape = 'u8[8192]{0}', space=vmem, size = 0x2000, scoped, tag = 'input window, operand 0, single buffered']
    #allocation5 [shape = 's32[1]{0}', space=sflag, size = 0x4, scoped, tag = 'scoped memory for tpu_custom_call.1']
    #allocation6 [shape = 's32[1]{0}', space=sflag, size = 0x4, scoped, tag = 'scoped memory for tpu_custom_call.1']
    #allocation7 [shape = 'u8[8192]{0}', space=vmem, size = 0x2000, scoped, tag = 'input window, operand 1, single buffered']
    #allocation8 [shape = 's32[1]{0}', space=sflag, size = 0x4, scoped, tag = 'scoped memory for tpu_custom_call.1']
    #allocation9 [shape = 'u8[1024]{0}', space=vmem, size = 0x400, scoped, tag = 'output window, operand 0, single buffered']
    %7 = vsyncpa [#allocation5], 0
    %8 = vsyncpa [#allocation8], 0
    %9 = vsyncpa [#allocation6], 0
    // Predicated region
    $region2: #{tpu_custom_call.1} parent=1 // pred_check
      _
    $region3: #{tpu_custom_call.1} parent=1 // pred_check_branch
      %11 = sbr.rel (0) target = $region5
    $region4: #{tpu_custom_call.1} parent=1 // pred_region
      %s13 = ssub.s32 256, 256
      %14 = vsyncadd [#allocation5], %s13
      %s16 = sshll.u32 [#allocation4], 4
      %s17 = int_to_ptr.vmem [resolvable:$true] %s16
      %19 = dma.hbm_to_vmem [thread:$0]  %s0, 256, %s17, [#allocation5]
    $region5: #{tpu_custom_call.1} parent=1 // pred_fallthru
      _
    // Predicated region
    $region6: #{tpu_custom_call.1} parent=1 // pred_check
      _
    $region7: #{tpu_custom_call.1} parent=1 // pred_check_branch
      %21 = sbr.rel (0) target = $region9
    $region8: #{tpu_custom_call.1} parent=1 // pred_region
      %s23 = ssub.s32 256, 256
      %24 = vsyncadd [#allocation8], %s23
      %s26 = sshll.u32 [#allocation7], 4
      %s27 = int_to_ptr.vmem [resolvable:$true] %s26
      %29 = dma.hbm_to_vmem [thread:$0]  %s1, 256, %s27, [#allocation8]
    $region9: #{tpu_custom_call.1} parent=1 // pred_fallthru
      _
    // Predicated region
    $region10: #{tpu_custom_call.1} parent=1 // pred_check
      _
    $region11: #{tpu_custom_call.1} parent=1 // pred_check_branch
      %31 = sbr.rel (0) target = $region13
    $region12: #{tpu_custom_call.1} parent=1 // pred_region
      %32 = dma.done [#allocation5], 256
    $region13: #{tpu_custom_call.1} parent=1 // pred_fallthru
      _
    // Predicated region
    $region14: #{tpu_custom_call.1} parent=1 // pred_check
      _
    $region15: #{tpu_custom_call.1} parent=1 // pred_check_branch
      %34 = sbr.rel (0) target = $region17
    $region16: #{tpu_custom_call.1} parent=1 // pred_region
      %35 = dma.done [#allocation8], 256
    $region17: #{tpu_custom_call.1} parent=1 // pred_fallthru
      _
    %p36 = scmp.eq.s32.totalorder 0, 0
    // Predicated region
    $region18: #{tpu_custom_call.1} parent=1 // pred_check
      %p37 = pneg %p36
    $region19: #{tpu_custom_call.1} parent=1 // pred_check_branch
      %39 = sbr.rel (%p37) target = $region21
    $region20: #{tpu_custom_call.1} parent=1 // pred_region
      %vm40 = vcmask 1024
      %41 = vst.msk [vmem:[#allocation2] sm:$0x3] %vm40, 0.0
      %42 = vst.msk [vmem:[#allocation3] sm:$0x3] %vm40, 0.0
    $region21: #{tpu_custom_call.1} parent=1 // pred_fallthru
      _
    %v43 = vld [vmem:[#allocation4] sm:$0xff]
    %v44 = vld [vmem:[#allocation4 + $0x8] sm:$0xff]
    %v45 = vld [vmem:[#allocation7] sm:$0xff]
    %v46 = vld [vmem:[#allocation7 + $0x8] sm:$0xff]
    %v47 = vld [vmem:[#allocation2] sm:$0x3]
    %v48 = vmul.f32 %v43, %v45
    %v49 = vmul.f32 %v44, %v46
    %v52 = vcombine.high %v48, %v48
    %v54 = vunpack.c.l.s4 1983009808
    %v55 = vunpack.c.0.s8 %v54
    %v56 = vlaneseq
    %v57 = vshrl.u32 %v56, 7
    %v58 = vsub.s32 %v55, %v57
    %v59 = vrot.slane %v48, %v58
    %v61 = vunpack.c.l.s4 1983009808
    %v62 = vunpack.c.0.s8 %v61
    %v63 = vlaneseq
    %v64 = vshrl.u32 %v63, 7
    %v65 = vsub.s32 %v62, %v64
    %v66 = vrot.slane %v52, %v65
    %v67 = vcombine.high %v59, %v59
    %v68 = vcombine.high %v66, %v66
    %v69 = vcombine.high %v49, %v49
    %v71 = vunpack.c.l.s4 1983009808
    %v72 = vunpack.c.0.s8 %v71
    %v73 = vlaneseq
    %v74 = vshrl.u32 %v73, 7
    %v75 = vsub.s32 %v72, %v74
    %v76 = vrot.slane %v49, %v75
    %v78 = vunpack.c.l.s4 1983009808
    %v79 = vunpack.c.0.s8 %v78
    %v80 = vlaneseq
    %v81 = vshrl.u32 %v80, 7
    %v82 = vsub.s32 %v79, %v81
    %v83 = vrot.slane %v69, %v82
    %v84 = vcombine.high %v76, %v76
    %v85 = vcombine.high %v83, %v83
    %vm94 = vcmask 1041408
    %v95 = vsel %vm94, %v59, 0.0
    %v96 = vsel %vm94, %v67, 0.0
    %v97 = vadd.f32 %v95, %v96
    %v98 = vsel %vm94, %v66, 0.0
    %v99 = vadd.f32 %v97, %v98
    %v100 = vsel %vm94, %v68, 0.0
    %v101 = vadd.f32 %v99, %v100
    %v102 = vsel %vm94, %v76, 0.0
    %v103 = vadd.f32 %v101, %v102
    %v104 = vsel %vm94, %v84, 0.0
    %v105 = vadd.f32 %v103, %v104
    %v106 = vsel %vm94, %v83, 0.0
    %v107 = vadd.f32 %v105, %v106
    %v108 = vsel %vm94, %v85, 0.0
    %v109 = vadd.f32 %v107, %v108
    %110 = vadd.xlane.f32.xlu0 %v109
    %v111 = vpop.xlane.xlu0 %110
    %v112 = vadd.f32 %v47, %v111
    %vm113 = vcmask 1024
    %114 = vst.msk [vmem:[#allocation2] sm:$0x3] %vm113, %v112
    %v115 = vmul.f32 %v43, %v43
    %v116 = vmul.f32 %v44, %v44
    %v117 = vmul.f32 %v45, %v45
    %v118 = vmul.f32 %v46, %v46
    %v119 = vadd.f32 %v115, %v117
    %v120 = vadd.f32 %v116, %v118
    %v121 = vld [vmem:[#allocation3] sm:$0x3]
    %v124 = vcombine.high %v119, %v119
    %v126 = vunpack.c.l.s4 1983009808
    %v127 = vunpack.c.0.s8 %v126
    %v128 = vlaneseq
    %v129 = vshrl.u32 %v128, 7
    %v130 = vsub.s32 %v127, %v129
    %v131 = vrot.slane %v119, %v130
    %v133 = vunpack.c.l.s4 1983009808
    %v134 = vunpack.c.0.s8 %v133
    %v135 = vlaneseq
    %v136 = vshrl.u32 %v135, 7
    %v137 = vsub.s32 %v134, %v136
    %v138 = vrot.slane %v124, %v137
    %v139 = vcombine.high %v131, %v131
    %v140 = vcombine.high %v138, %v138
    %v141 = vcombine.high %v120, %v120
    %v143 = vunpack.c.l.s4 1983009808
    %v144 = vunpack.c.0.s8 %v143
    %v145 = vlaneseq
    %v146 = vshrl.u32 %v145, 7
    %v147 = vsub.s32 %v144, %v146
    %v148 = vrot.slane %v120, %v147
    %v150 = vunpack.c.l.s4 1983009808
    %v151 = vunpack.c.0.s8 %v150
    %v152 = vlaneseq
    %v153 = vshrl.u32 %v152, 7
    %v154 = vsub.s32 %v151, %v153
    %v155 = vrot.slane %v141, %v154
    %v156 = vcombine.high %v148, %v148
    %v157 = vcombine.high %v155, %v155
    %v166 = vsel %vm94, %v131, 0.0
    %v167 = vsel %vm94, %v139, 0.0
    %v168 = vadd.f32 %v166, %v167
    %v169 = vsel %vm94, %v138, 0.0
    %v170 = vadd.f32 %v168, %v169
    %v171 = vsel %vm94, %v140, 0.0
    %v172 = vadd.f32 %v170, %v171
    %v173 = vsel %vm94, %v148, 0.0
    %v174 = vadd.f32 %v172, %v173
    %v175 = vsel %vm94, %v156, 0.0
    %v176 = vadd.f32 %v174, %v175
    %v177 = vsel %vm94, %v155, 0.0
    %v178 = vadd.f32 %v176, %v177
    %v179 = vsel %vm94, %v157, 0.0
    %v180 = vadd.f32 %v178, %v179
    %181 = vadd.xlane.f32.xlu0 %v180
    %v182 = vpop.xlane.xlu0 %181
    %v183 = vadd.f32 %v121, %v182
    %184 = vst.msk [vmem:[#allocation3] sm:$0x3] %vm113, %v183
    // Predicated region
    $region22: #{tpu_custom_call.1} parent=1 // pred_check
      %p185 = pneg %p36
    $region23: #{tpu_custom_call.1} parent=1 // pred_check_branch
      %187 = sbr.rel (%p185) target = $region25
    $region24: #{tpu_custom_call.1} parent=1 // pred_region
      %v188 = vld [vmem:[#allocation2] sm:$0x3]
      %v189 = vadd.f32 %v188, 1.0
      %v190 = vld [vmem:[#allocation3] sm:$0x3]
      %v191 = vadd.f32 %v190, 1.0
      %v192 = vrcp.pop %v191
      %v193 = vmul.f32 %v189, %v192
      %v194 = vsub.f32 1.0, %v193
      %196 = vset.pattern.permute.xlu0 0
      %197 = vperm.xlu0 %196, %v194
      %v198 = vpop.permute.xlu0 %197
      %200 = vst [vmem:[#allocation9] sm:$0x3] %v198
    $region25: #{tpu_custom_call.1} parent=1 // pred_fallthru
      _
    // Predicated region
    $region26: #{tpu_custom_call.1} parent=1 // pred_check
      _
    $region27: #{tpu_custom_call.1} parent=1 // pred_check_branch
      %202 = sbr.rel (0) target = $region29
    $region28: #{tpu_custom_call.1} parent=1 // pred_region
      %s204 = ssub.s32 32, 32
      %205 = vsyncadd [#allocation6], %s204
      %s207 = sshll.u32 [#allocation9], 4
      %s208 = int_to_ptr.vmem [resolvable:$true] %s207
      %210 = dma.vmem_to_hbm [thread:$0]  %s208, 32, %s2, [#allocation6]
    $region29: #{tpu_custom_call.1} parent=1 // pred_fallthru
      _
    // Predicated region
    $region30: #{tpu_custom_call.1} parent=1 // pred_check
      _
    $region31: #{tpu_custom_call.1} parent=1 // pred_check_branch
      %212 = sbr.rel (0) target = $region33
    $region32: #{tpu_custom_call.1} parent=1 // pred_region
      %213 = dma.done [#allocation6], 32
    $region33: #{tpu_custom_call.1} parent=1 // pred_fallthru
      _
    %214 = vsyncpa [#allocation5], 1
    %215 = vsyncpa [#allocation8], 1
    %216 = vsyncpa [#allocation6], 1

</llo_original>
